<compile_context>
chip_gen: v7x
topology: tpu7x:2x2x1
jax: 0.10.0
libtpu: 0.0.40
codegen_flags: <defaults>
</compile_context>

<pallas_src>
import jax
import jax.numpy as jnp
from jax.experimental import pallas as pl
from jax.experimental.pallas import tpu as pltpu

_LANES = 128
_SUBLANES = 8
_MAX_BLOCK_ROWS = 4096          # (4096, 128) f32 = 2 MiB / block, 4 MiB double-buffered
_PALLAS_MIN_BYTES = 1 << 20     # below ~1 MiB plain XLA wins (pure launch overhead)


def _sumsq_kernel(x_ref, o_ref, acc_ref):
    i = pl.program_id(0)

    @pl.when(i == 0)
    def _init():
        acc_ref[...] = jnp.zeros_like(acc_ref)

    x = x_ref[...]                                    # (R, 128) f32 tile
    sq = x * x
    # Fold rows into an (8, 128) accumulator: elementwise vreg adds only (VALU);
    # no per-block cross-lane reduction, no per-block scalar store.
    acc_ref[...] += jnp.sum(sq.reshape(-1, _SUBLANES, _LANES), axis=0)

    @pl.when(i == pl.num_programs(0) - 1)
    def _finalize():
        # Single XLU reduce + single SMEM scalar write for the whole kernel.
        o_ref[0, 0] = jnp.sum(acc_ref[...])


def _pack(params):
    """Flatten+concat params into a zero-padded (total_rows, 128) f32 buffer."""
    flat = jnp.concatenate([p.reshape(-1).astype(jnp.float32) for p in params])
    n = int(flat.shape[0])
    rows_needed = -(-n // _LANES)
    rows_needed = -(-rows_needed // _SUBLANES) * _SUBLANES        # multiple of 8
    block_rows = min(_MAX_BLOCK_ROWS, rows_needed)
    total_rows = -(-rows_needed // block_rows) * block_rows       # multiple of block
    pad = total_rows * _LANES - n
    flat = jnp.pad(flat, (0, pad))   # zeros don't change the sum of squares
    return flat.reshape(total_rows, _LANES), block_rows


def _sphere_pallas(x, block_rows):
    total_rows = x.shape[0]
    n = total_rows * _LANES
    grid = (total_rows // block_rows,)
    out = pl.pallas_call(
        _sumsq_kernel,
        out_shape=jax.ShapeDtypeStruct((1, 1), jnp.float32),
        grid=grid,
        in_specs=[pl.BlockSpec((block_rows, _LANES), lambda i: (i, 0))],
        out_specs=pl.BlockSpec((1, 1), lambda i: (0, 0),
                               memory_space=pltpu.SMEM),
        scratch_shapes=[pltpu.VMEM((_SUBLANES, _LANES), jnp.float32)],
        compiler_params=pltpu.CompilerParams(
            dimension_semantics=("arbitrary",)),
        cost_estimate=pl.CostEstimate(
            flops=2 * n, transcendentals=0, bytes_accessed=4 * n),
    )(x)
    return out[0, 0]


def sphere_sum_of_squares(params, force_pallas=False):
    """sum_p sum(p**2) over a list of arbitrarily-shaped parameters."""
    total_bytes = 4 * sum(int(p.size) for p in params)
    if not force_pallas and total_bytes < _PALLAS_MIN_BYTES:
        # Tiny workloads are launch-overhead bound; plain XLA is faster.
        return sum(jnp.sum(p.astype(jnp.float32) ** 2) for p in params)
    x, block_rows = _pack(params)
    return _sphere_pallas(x, block_rows)


def make_params():
    """Deterministic parameter set mirroring the shapes in _TestModel.__init__."""
    key = jax.random.PRNGKey(0)
    randn_shapes = [
        (10,), (1, 10), (10, 1), (1, 1, 10), (1, 10, 1), (1, 1, 10),
        (10, 10), (4, 4, 4), (3, 3, 3, 3), (2, 2, 2, 2, 2, 2, 2),
        (10, 1, 3, 1, 1),
    ]
    keys = jax.random.split(key, len(randn_shapes))
    randn_params = [jax.random.normal(k, s, dtype=jnp.float32)
                    for k, s in zip(keys, randn_shapes)]
    params = [
        jnp.asarray(1.0, dtype=jnp.float32),            # torch.tensor(1.0)
        jnp.asarray([1.0], dtype=jnp.float32),          # torch.tensor([1.0])
        jnp.asarray([[1.0]], dtype=jnp.float32),        # torch.tensor([[1.0]])
        *randn_params,
        jnp.zeros((2, 2), dtype=jnp.float32),
        jnp.ones((2, 2), dtype=jnp.float32),
    ]
    return params


if __name__ == "__main__":
    params = make_params()

    # Force the Pallas path so the kernel is actually exercised on the tiny
    # test workload (the size-threshold bypass is for production use).
    result = sphere_sum_of_squares(params, force_pallas=True)
    result = jax.block_until_ready(result)

    # pure-JAX reference
    ref = sum(jnp.sum(p.astype(jnp.float32) ** 2) for p in params)
    assert jnp.allclose(result, ref, rtol=1e-5, atol=1e-5), (result, ref)

    print("KERNEL_OK")
</pallas_src>

<mosaic_0001>
module attributes {stable_mosaic.version = 11 : i64} {
  func.func @_sumsq_kernel(%arg0: i32, %arg1: memref<8x128xf32, #tpu.memory_space<vmem>>, %arg2: memref<1x1xf32, #tpu.memory_space<smem>>, %arg3: memref<8x128xf32, #tpu.memory_space<vmem>>) attributes {dimension_semantics = [#tpu.dimension_semantics<arbitrary>], iteration_bounds = array<i64: 1>, scalar_prefetch = 0 : i64, scratch_operands = 1 : i64, tpu.core_type = #tpu.core_type<tc>, window_params = [{transform_indices = @transform_0, window_bounds = array<i64: 8, 128>}, {transform_indices = @transform_1, window_bounds = array<i64: 1, 1>}]} {
    %c0_i32 = arith.constant 0 : i32
    %0 = arith.cmpi eq, %arg0, %c0_i32 : i32
    %1 = arith.extui %0 : i1 to i32
    %c0_i32_0 = arith.constant 0 : i32
    %2 = arith.cmpi ne, %1, %c0_i32_0 : i32
    scf.if %2 {
      %cst_8 = arith.constant 0.000000e+00 : f32
      %13 = vector.broadcast %cst_8 : f32 to vector<8x128xf32>
      %c0_9 = arith.constant 0 : index
      %c0_10 = arith.constant 0 : index
      %14 = vector.load %arg3[%c0_9, %c0_10] : memref<8x128xf32, #tpu.memory_space<vmem>>, vector<8x128xf32>
      tpu.vector_store %arg3[%c0_9, %c0_10], %13 {strides = array<i32>} : memref<8x128xf32, #tpu.memory_space<vmem>>, vector<8x128xf32>,
    } else {
    }
    %c0 = arith.constant 0 : index
    %c0_1 = arith.constant 0 : index
    %3 = vector.load %arg1[%c0, %c0_1] : memref<8x128xf32, #tpu.memory_space<vmem>>, vector<8x128xf32>
    %4 = arith.mulf %3, %3 : vector<8x128xf32>
    %c0_2 = arith.constant 0 : index
    %c0_3 = arith.constant 0 : index
    %5 = vector.load %arg3[%c0_2, %c0_3] : memref<8x128xf32, #tpu.memory_space<vmem>>, vector<8x128xf32>
    %6 = vector.shape_cast %4 : vector<8x128xf32> to vector<1x8x128xf32>
    %cst = arith.constant dense<0.000000e+00> : vector<8x128xf32>
    %7 = vector.multi_reduction <add>, %6, %cst [0] : vector<1x8x128xf32> to vector<8x128xf32>
    %8 = arith.addf %5, %7 : vector<8x128xf32>
    %c0_4 = arith.constant 0 : index
    %c0_5 = arith.constant 0 : index
    %9 = vector.load %arg3[%c0_4, %c0_5] : memref<8x128xf32, #tpu.memory_space<vmem>>, vector<8x128xf32>
    tpu.vector_store %arg3[%c0_4, %c0_5], %8 {strides = array<i32>} : memref<8x128xf32, #tpu.memory_space<vmem>>, vector<8x128xf32>,
    %c0_i32_6 = arith.constant 0 : i32
    %10 = arith.cmpi eq, %arg0, %c0_i32_6 : i32
    %11 = arith.extui %10 : i1 to i32
    %c0_i32_7 = arith.constant 0 : i32
    %12 = arith.cmpi ne, %11, %c0_i32_7 : i32
    scf.if %12 {
      %c0_8 = arith.constant 0 : index
      %c0_9 = arith.constant 0 : index
      %13 = vector.load %arg3[%c0_8, %c0_9] : memref<8x128xf32, #tpu.memory_space<vmem>>, vector<8x128xf32>
      %14 = vector.shape_cast %13 : vector<8x128xf32> to vector<1x8x128xf32>
      %cst_10 = arith.constant dense<0.000000e+00> : vector<1xf32>
      %15 = vector.multi_reduction <add>, %14, %cst_10 [1, 2] : vector<1x8x128xf32> to vector<1xf32>
      %16 = vector.shape_cast %15 : vector<1xf32> to vector<1x1x1xf32>
      %17 = vector.extract %16[0, 0, 0] : f32 from vector<1x1x1xf32>
      %c0_11 = arith.constant 0 : index
      %c0_12 = arith.constant 0 : index
      %18 = memref.load %arg2[%c0_11, %c0_12] : memref<1x1xf32, #tpu.memory_space<smem>>
      memref.store %17, %arg2[%c0_11, %c0_12] : memref<1x1xf32, #tpu.memory_space<smem>>
    } else {
    }
    return
  }
  func.func @transform_0(%arg0: i32) -> (i32, i32) {
    %c0_i32 = arith.constant 0 : i32
    %c0_i32_0 = arith.constant 0 : i32
    return %arg0, %c0_i32 : i32, i32
  }
  func.func @transform_1(%arg0: i32) -> (i32, i32) {
    %c0_i32 = arith.constant 0 : i32
    %c0_i32_0 = arith.constant 0 : i32
    %c0_i32_1 = arith.constant 0 : i32
    return %c0_i32, %c0_i32_0 : i32, i32
  }
}

</mosaic_0001>

<llo_original>
// kernel: tpu_custom_call.1
$region0: #{tpu_custom_call.1}
  #allocation0 [shape = 'u32[]', space=smem, size = 0x4, offset = 0x4, fixed_abs, tag = 'smem constant byte address 0x4 - core index']
  #allocation1 [shape = 'u32[144,128]{1,0:T(1,128)}', space=vmem, size = 0x12000, scoped, tag = 'internal scratch']
  #allocation2 [shape = 'f32[8,128]{1,0:T(8,128)}', space=vmem, size = 0x1000, scoped, tag = 'scratch operand']
  %s0 = inlined_call_operand.hbm [shape: f32[8,128], index: 0, kind: input, shape index: {}]
  %s1 = inlined_call_operand.hbm [shape: f32[1,1], index: 1, kind: output, shape index: {}]
  %s2 = sld [smem:[#allocation0]]
  $region26: #{tpu_custom_call.1} parent=0
    _
  %s4 = ssub.s32 1, %s2
  %s5 = scalar_select 0, %s4, %s2
  $region1: #{tpu_custom_call.1} parent=0
    #allocation3 [shape = 'u8[4096]{0}', space=vmem, size = 0x1000, scoped, tag = 'input window, operand 0, single buffered']
    #allocation4 [shape = 's32[1]{0}', space=sflag, size = 0x4, scoped, tag = 'scoped memory for tpu_custom_call.1']
    #allocation5 [shape = 's32[1]{0}', space=sflag, size = 0x4, scoped, tag = 'scoped memory for tpu_custom_call.1']
    #allocation6 [shape = 'u8[512]{0}', space=smem, size = 0x200, scoped, tag = 'output window, operand 0, single buffered']
    %6 = vsyncpa [#allocation4], 0
    %7 = vsyncpa [#allocation5], 0
    // Predicated region
    $region2: #{tpu_custom_call.1} parent=1 // pred_check
      _
    $region3: #{tpu_custom_call.1} parent=1 // pred_check_branch
      %9 = sbr.rel (0) target = $region5
    $region4: #{tpu_custom_call.1} parent=1 // pred_region
      %s11 = ssub.s32 128, 128
      %12 = vsyncadd [#allocation4], %s11
      %s14 = sshll.u32 [#allocation3], 4
      %s15 = int_to_ptr.vmem [resolvable:$true] %s14
      %17 = dma.hbm_to_vmem [thread:$0]  %s0, 128, %s15, [#allocation4]
    $region5: #{tpu_custom_call.1} parent=1 // pred_fallthru
      _
    // Predicated region
    $region6: #{tpu_custom_call.1} parent=1 // pred_check
      _
    $region7: #{tpu_custom_call.1} parent=1 // pred_check_branch
      %19 = sbr.rel (0) target = $region9
    $region8: #{tpu_custom_call.1} parent=1 // pred_region
      %20 = dma.done [#allocation4], 128
    $region9: #{tpu_custom_call.1} parent=1 // pred_fallthru
      _
    %p21 = scmp.eq.s32.totalorder 0, 0
    // Predicated region
    $region10: #{tpu_custom_call.1} parent=1 // pred_check
      %p22 = pneg %p21
    $region11: #{tpu_custom_call.1} parent=1 // pred_check_branch
      %24 = sbr.rel (%p22) target = $region13
    $region12: #{tpu_custom_call.1} parent=1 // pred_region
      %25 = vst [vmem:[#allocation2] sm:$0xff] 0.0
    $region13: #{tpu_custom_call.1} parent=1 // pred_fallthru
      _
    %v26 = vld [vmem:[#allocation3] sm:$0xff]
    %v27 = vmul.f32 %v26, %v26
    %v28 = vld [vmem:[#allocation2] sm:$0xff]
    %v29 = vadd.f32 %v27, 0.0
    %v30 = vadd.f32 %v28, %v29
    %31 = vst [vmem:[#allocation2] sm:$0xff] %v30
    // Predicated region
    $region14: #{tpu_custom_call.1} parent=1 // pred_check
      %p32 = pneg %p21
    $region15: #{tpu_custom_call.1} parent=1 // pred_check_branch
      %34 = sbr.rel (%p32) target = $region17
    $region16: #{tpu_custom_call.1} parent=1 // pred_region
      %v35 = vld [vmem:[#allocation2] sm:$0xff]
      %36 = vadd.xlane.f32.xlu0 %v35
      %v37 = vpop.xlane.xlu0 %36
      %v38 = vrot.slane %v37, 4
      %v39 = vadd.f32 %v37, %v38
      %v40 = vrot.slane %v39, 2
      %v41 = vadd.f32 %v39, %v40
      %v42 = vrot.slane %v41, 1
      %v43 = vadd.f32 %v41, %v42
      %s44 = vtos %v43
      %s45 = scalar_lea.smem [#allocation6], 0
      %46 = sst [smem:[%s45]] %s44
    $region17: #{tpu_custom_call.1} parent=1 // pred_fallthru
      _
    // Predicated region
    $region18: #{tpu_custom_call.1} parent=1 // pred_check
      _
    $region19: #{tpu_custom_call.1} parent=1 // pred_check_branch
      %48 = sbr.rel (0) target = $region21
    $region20: #{tpu_custom_call.1} parent=1 // pred_region
      %s50 = ssub.s32 16, 16
      %51 = vsyncadd [#allocation5], %s50
      %54 = dma.smem_to_hbm [#allocation6], 16, %s1, [#allocation5]
    $region21: #{tpu_custom_call.1} parent=1 // pred_fallthru
      _
    // Predicated region
    $region22: #{tpu_custom_call.1} parent=1 // pred_check
      _
    $region23: #{tpu_custom_call.1} parent=1 // pred_check_branch
      %56 = sbr.rel (0) target = $region25
    $region24: #{tpu_custom_call.1} parent=1 // pred_region
      %57 = dma.done [#allocation5], 16
    $region25: #{tpu_custom_call.1} parent=1 // pred_fallthru
      _
    %58 = sfence
    %59 = vsyncpa [#allocation4], 1
    %60 = vsyncpa [#allocation5], 1

</llo_original>
